<compile_context>
chip_gen: v7x
topology: tpu7x:2x2x1
jax: 0.10.0
libtpu: 0.0.40
codegen_flags: <defaults>
</compile_context>

<pallas_src>
import jax
import jax.numpy as jnp
from jax import lax
from jax.experimental import pallas as pl
from jax.experimental.pallas import tpu as pltpu

_LANE_CANDIDATES = (1024, 512, 256, 128)
_TARGET_BLOCK_BYTES = 8 * 1024 * 1024   # ~8 MiB of input per operand per block
_CHUNK_ELEMS = 64 * 1024                # in-kernel compute chunk (bounds code size)
_SMALL_MAX_ELEMS = 512 * 1024           # whole-array single-block path threshold
_VMEM_LIMIT_BYTES = 48 * 1024 * 1024    # safe on v5e/v6e (128 MiB) and v7x (64 MiB)


def _round_down(x, m):
    return (x // m) * m


def _small_mse_kernel(x_ref, t_ref, out_ref):
    """Whole array fits in one block: single fused diff/square/reduce."""
    d = x_ref[...].astype(jnp.float32) - t_ref[...].astype(jnp.float32)
    out_ref[0, 0] = jnp.sum(d * d)


def _build_stream_kernel(rows, lane, block_rows, chunk_rows, blocks_per_part, nblk):
    """Streaming sum((x - t)^2) over (rows, lane), grid = (parts, blocks/part)."""
    nchunks_full = block_rows // chunk_rows
    ragged = (rows % block_rows) != 0
    valid_last = rows - (nblk - 1) * block_rows
    nchunks_last = -(-valid_last // chunk_rows)  # only chunks overlapping valid rows

    def kernel(x_ref, t_ref, out_ref, acc_ref):
        p = pl.program_id(0)               # partition (outer, "parallel")
        j = pl.program_id(1)               # row-block within partition ("arbitrary")
        gi = p * blocks_per_part + j       # global row-block index (static arithmetic)

        @pl.when(j == 0)
        def _init():
            acc_ref[...] = jnp.zeros_like(acc_ref)

        def _chunk_partial(r0, masked):
            # (chunk_rows, lane) slice -> f32 squared diff -> fold to (8, lane).
            xs = x_ref[pl.ds(r0, chunk_rows), :].astype(jnp.float32)
            ts = t_ref[pl.ds(r0, chunk_rows), :].astype(jnp.float32)
            d = xs - ts
            sq = d * d
            if masked:
                # Zero rows hanging past the array edge (their VMEM contents are
                # unspecified for the partial last block).  select() does not
                # propagate NaN/Inf from the unselected operand.
                rid = (gi * block_rows + r0
                       + lax.broadcasted_iota(jnp.int32, (chunk_rows, lane), 0))
                sq = jnp.where(rid < rows, sq, jnp.float32(0.0))
            # Pure-VALU partial sums into a tiny (8, lane) accumulator shape.
            return jnp.sum(sq.reshape(chunk_rows // 8, 8, lane), axis=0)

        def _accumulate(nchunks, masked):
            def body(c, carry):
                r0 = pl.multiple_of(c * chunk_rows, chunk_rows)
                acc_ref[...] += _chunk_partial(r0, masked)
                return carry
            lax.fori_loop(0, nchunks, body, 0)

        if ragged:
            # Mask only on the (single) ragged last block; full blocks unmasked.
            @pl.when(gi < nblk - 1)
            def _full_blocks():
                _accumulate(nchunks_full, masked=False)

            @pl.when(gi == nblk - 1)
            def _tail_block():
                _accumulate(nchunks_last, masked=True)
        else:
            _accumulate(nchunks_full, masked=False)

        @pl.when(j == blocks_per_part - 1)
        def _finalize():
            # One cross-lane/sublane reduce per partition, single SMEM store.
            out_ref[0, 0] = jnp.sum(acc_ref[...])

    return kernel


def _mse_mean_pallas(x, target):
    """mean((x - target)^2) over all elements, computed with a Pallas kernel."""
    n = x.size
    xf = x.reshape(-1)
    tf = target.reshape(-1)

    # Widest lane-dense view that needs no padding (common for conv features).
    lane = None
    for cand in _LANE_CANDIDATES:
        if n % cand == 0:
            lane = cand
            break
    if lane is None:
        # Rare fallback: tiny zero-pad to a multiple of 128 (zeros contribute 0
        # to the squared-difference sum; the mean still divides by the true n).
        # TODO(synk): replace this extra HBM pass with an in-kernel flat-index
        # mask of the tail block.
        lane = 128
        pad = (-n) % lane
        xf = jnp.pad(xf, (0, pad))
        tf = jnp.pad(tf, (0, pad))

    rows = xf.size // lane
    x2d = xf.reshape(rows, lane)
    t2d = tf.reshape(rows, lane)

    bytes_in = (x2d.size * x2d.dtype.itemsize
                + t2d.size * t2d.dtype.itemsize)

    # --- Small path: whole array in one block (covers tiny/odd row counts). ---
    if rows * lane <= _SMALL_MAX_ELEMS:
        sq_sum = pl.pallas_call(
            _small_mse_kernel,
            out_shape=jax.ShapeDtypeStruct((1, 1), jnp.float32),
            grid_spec=pltpu.PrefetchScalarGridSpec(
                num_scalar_prefetch=0,
                grid=(1,),
                in_specs=[
                    pl.BlockSpec((rows, lane), lambda i: (0, 0)),
                    pl.BlockSpec((rows, lane), lambda i: (0, 0)),
                ],
                out_specs=pl.BlockSpec((1, 1), lambda i: (0, 0),
                                       memory_space=pltpu.SMEM),
            ),
            compiler_params=pltpu.CompilerParams(
                dimension_semantics=("arbitrary",),
                vmem_limit_bytes=_VMEM_LIMIT_BYTES,
            ),
            cost_estimate=pl.CostEstimate(
                flops=3 * n, transcendentals=0, bytes_accessed=bytes_in + 4),
        )(x2d, t2d)
        return sq_sum[0, 0] / jnp.float32(n)

    # --- Streaming path: byte-sized blocks, chunked compute, tiny accumulator. ---
    itemsize = max(x2d.dtype.itemsize, t2d.dtype.itemsize)
    # Compute-chunk rows: ~64K elements, multiple of 8 (sublane granularity).
    chunk_rows = max(8, _round_down(_CHUNK_ELEMS // lane, 8))
    # DMA-block rows: ~8 MiB of input bytes per operand, multiple of chunk_rows.
    br_target = max(chunk_rows,
                    _round_down(_TARGET_BLOCK_BYTES // (lane * itemsize), chunk_rows))
    block_rows = min(br_target, max(chunk_rows, _round_down(rows, chunk_rows)))
    nblk = -(-rows // block_rows)

    # Two partial-sum partitions when the block count splits evenly.
    nparts = 2 if (nblk >= 2 and nblk % 2 == 0) else 1
    bpp = nblk // nparts

    kernel = _build_stream_kernel(rows, lane, block_rows, chunk_rows, bpp, nblk)
    in_map = lambda p, j: (p * bpp + j, 0)

    partials = pl.pallas_call(
        kernel,
        out_shape=jax.ShapeDtypeStruct((nparts, 1), jnp.float32),
        grid_spec=pltpu.PrefetchScalarGridSpec(
            num_scalar_prefetch=0,
            grid=(nparts, bpp),
            in_specs=[
                pl.BlockSpec((block_rows, lane), in_map),
                pl.BlockSpec((block_rows, lane), in_map),
            ],
            out_specs=pl.BlockSpec((1, 1), lambda p, j: (p, 0),
                                   memory_space=pltpu.SMEM),
            scratch_shapes=[pltpu.VMEM((8, lane), jnp.float32)],
        ),
        compiler_params=pltpu.CompilerParams(
            dimension_semantics=("parallel", "arbitrary"),
            vmem_limit_bytes=_VMEM_LIMIT_BYTES,
        ),
        cost_estimate=pl.CostEstimate(
            flops=3 * n, transcendentals=0,
            bytes_accessed=bytes_in + 4 * nparts),
    )(x2d, t2d)

    return jnp.sum(partials) / jnp.float32(n)


def content_loss_forward(x, target):
    """Equivalent of ContentLoss.forward: returns (input, mse_loss)."""
    assert x.shape == target.shape, "input/target shape mismatch"
    loss = _mse_mean_pallas(x, target)
    # The PyTorch module stashes `loss` as an attribute and returns the input
    # unchanged; here the loss is returned alongside the pass-through input.
    return x, loss


if __name__ == "__main__":
    # Primary check: small NCHW conv-feature shape, f32, single-block path.
    B, C, H, W = 2, 4, 16, 16
    key = jax.random.PRNGKey(0)
    k_x, k_t = jax.random.split(key)

    x = jax.random.normal(k_x, (B, C, H, W), dtype=jnp.float32)
    target = jax.random.normal(k_t, (B, C, H, W), dtype=jnp.float32)

    fwd = jax.jit(content_loss_forward)
    out, loss = fwd(x, target)
    out = jax.block_until_ready(out)
    loss = jax.block_until_ready(loss)

    ref_loss = jnp.mean((x - target) ** 2)
    assert jnp.allclose(loss, ref_loss, rtol=1e-5, atol=1e-6), (loss, ref_loss)
    assert jnp.array_equal(out, x)  # pass-through output

    # Secondary check: native bf16 inputs, streaming multi-block path with a
    # masked ragged last block and the 2-partition partial-sum grid.
    k_x2, k_t2 = jax.random.split(jax.random.PRNGKey(1))
    shape2 = (1, 8, 300, 300)
    x2 = jax.random.normal(k_x2, shape2, dtype=jnp.bfloat16)
    t2 = jax.random.normal(k_t2, shape2, dtype=jnp.bfloat16)

    out2, loss2 = jax.jit(content_loss_forward)(x2, t2)
    out2 = jax.block_until_ready(out2)
    loss2 = jax.block_until_ready(loss2)

    d2 = x2.astype(jnp.float32) - t2.astype(jnp.float32)
    ref2 = jnp.mean(d2 * d2)
    assert jnp.allclose(loss2, ref2, rtol=1e-4, atol=1e-6), (loss2, ref2)
    assert jnp.array_equal(out2, x2)

    print("KERNEL_OK")
</pallas_src>

<mosaic_0001>
module attributes {stable_mosaic.version = 11 : i64} {
  func.func @_small_mse_kernel(%arg0: i32, %arg1: memref<2x1024xf32, #tpu.memory_space<vmem>>, %arg2: memref<2x1024xf32, #tpu.memory_space<vmem>>, %arg3: memref<1x1xf32, #tpu.memory_space<smem>>) attributes {dimension_semantics = [#tpu.dimension_semantics<arbitrary>], iteration_bounds = array<i64: 1>, scalar_prefetch = 0 : i64, scratch_operands = 0 : i64, tpu.core_type = #tpu.core_type<tc>, window_params = [{pipeline_mode = #tpu.pipeline_mode<synchronous>, transform_indices = @transform_0, window_bounds = array<i64: 2, 1024>}, {pipeline_mode = #tpu.pipeline_mode<synchronous>, transform_indices = @transform_1, window_bounds = array<i64: 2, 1024>}, {transform_indices = @transform_2, window_bounds = array<i64: 1, 1>}]} {
    %c0 = arith.constant 0 : index
    %c0_0 = arith.constant 0 : index
    %0 = vector.load %arg1[%c0, %c0_0] : memref<2x1024xf32, #tpu.memory_space<vmem>>, vector<2x1024xf32>
    %c0_1 = arith.constant 0 : index
    %c0_2 = arith.constant 0 : index
    %1 = vector.load %arg2[%c0_1, %c0_2] : memref<2x1024xf32, #tpu.memory_space<vmem>>, vector<2x1024xf32>
    %2 = arith.subf %0, %1 : vector<2x1024xf32>
    %3 = arith.mulf %2, %2 : vector<2x1024xf32>
    %4 = vector.shape_cast %3 : vector<2x1024xf32> to vector<1x2x1024xf32>
    %cst = arith.constant dense<0.000000e+00> : vector<1xf32>
    %5 = vector.multi_reduction <add>, %4, %cst [1, 2] : vector<1x2x1024xf32> to vector<1xf32>
    %6 = vector.shape_cast %5 : vector<1xf32> to vector<1x1x1xf32>
    %7 = vector.extract %6[0, 0, 0] : f32 from vector<1x1x1xf32>
    %c0_3 = arith.constant 0 : index
    %c0_4 = arith.constant 0 : index
    %8 = memref.load %arg3[%c0_3, %c0_4] : memref<1x1xf32, #tpu.memory_space<smem>>
    memref.store %7, %arg3[%c0_3, %c0_4] : memref<1x1xf32, #tpu.memory_space<smem>>
    return
  }
  func.func @transform_0(%arg0: i32) -> (i32, i32) {
    %c0_i32 = arith.constant 0 : i32
    %c0_i32_0 = arith.constant 0 : i32
    %c0_i32_1 = arith.constant 0 : i32
    return %c0_i32, %c0_i32_0 : i32, i32
  }
  func.func @transform_1(%arg0: i32) -> (i32, i32) {
    %c0_i32 = arith.constant 0 : i32
    %c0_i32_0 = arith.constant 0 : i32
    %c0_i32_1 = arith.constant 0 : i32
    return %c0_i32, %c0_i32_0 : i32, i32
  }
  func.func @transform_2(%arg0: i32) -> (i32, i32) {
    %c0_i32 = arith.constant 0 : i32
    %c0_i32_0 = arith.constant 0 : i32
    %c0_i32_1 = arith.constant 0 : i32
    return %c0_i32, %c0_i32_0 : i32, i32
  }
}

</mosaic_0001>

<llo_original>
// kernel: content_loss_forward.1
$region0: #{content_loss_forward.1}
  #allocation0 [shape = 'u32[]', space=smem, size = 0x4, offset = 0x4, fixed_abs, tag = 'smem constant byte address 0x4 - core index']
  #allocation1 [shape = 'u32[144,128]{1,0:T(1,128)}', space=vmem, size = 0x12000, scoped, tag = 'internal scratch']
  %s0 = inlined_call_operand.vmem [shape: f32[2,1024], index: 0, kind: input, shape index: {}]
  %s1 = inlined_call_operand.vmem [shape: f32[2,1024], index: 1, kind: input, shape index: {}]
  %s2 = inlined_call_operand.hbm [shape: f32[1,1], index: 2, kind: output, shape index: {}]
  %s3 = sld [smem:[#allocation0]]
  $region18: #{content_loss_forward.1} parent=0
    _
  %s5 = ssub.s32 1, %s3
  %s6 = scalar_select 0, %s5, %s3
  $region1: #{content_loss_forward.1} parent=0
    #allocation2 [shape = 'u8[512]{0}', space=smem, size = 0x200, scoped, tag = 'output window, operand 0, single buffered']
    #allocation3 [shape = 's32[1]{0}', space=sflag, size = 0x4, scoped, tag = 'scoped memory for content_loss_forward.1']
    %7 = vsyncpa [#allocation3], 0
    // Predicated region
    $region2: #{content_loss_forward.1} parent=1 // pred_check
      _
    $region3: #{content_loss_forward.1} parent=1 // pred_check_branch
      %9 = sbr.rel (0) target = $region5
    $region4: #{content_loss_forward.1} parent=1 // pred_region
      _
    $region5: #{content_loss_forward.1} parent=1 // pred_fallthru
      _
    // Predicated region
    $region6: #{content_loss_forward.1} parent=1 // pred_check
      _
    $region7: #{content_loss_forward.1} parent=1 // pred_check_branch
      %11 = sbr.rel (0) target = $region9
    $region8: #{content_loss_forward.1} parent=1 // pred_region
      _
    $region9: #{content_loss_forward.1} parent=1 // pred_fallthru
      _
    %v12 = vld [vmem:[%s0] sm:$0xff]
    %v13 = vld [vmem:[%s0 + $0x8] sm:$0xff]
    %v14 = vld [vmem:[%s1] sm:$0xff]
    %v15 = vld [vmem:[%s1 + $0x8] sm:$0xff]
    %v16 = vsub.f32 %v12, %v14
    %v17 = vsub.f32 %v13, %v15
    %v18 = vmul.f32 %v16, %v16
    %v19 = vmul.f32 %v17, %v17
    %v22 = vcombine.high %v18, %v18
    %v24 = vunpack.c.l.s4 1983009808
    %v25 = vunpack.c.0.s8 %v24
    %v26 = vlaneseq
    %v27 = vshrl.u32 %v26, 7
    %v28 = vsub.s32 %v25, %v27
    %v29 = vrot.slane %v18, %v28
    %v31 = vunpack.c.l.s4 1983009808
    %v32 = vunpack.c.0.s8 %v31
    %v33 = vlaneseq
    %v34 = vshrl.u32 %v33, 7
    %v35 = vsub.s32 %v32, %v34
    %v36 = vrot.slane %v22, %v35
    %v37 = vcombine.high %v29, %v29
    %v38 = vcombine.high %v36, %v36
    %v39 = vcombine.high %v19, %v19
    %v41 = vunpack.c.l.s4 1983009808
    %v42 = vunpack.c.0.s8 %v41
    %v43 = vlaneseq
    %v44 = vshrl.u32 %v43, 7
    %v45 = vsub.s32 %v42, %v44
    %v46 = vrot.slane %v19, %v45
    %v48 = vunpack.c.l.s4 1983009808
    %v49 = vunpack.c.0.s8 %v48
    %v50 = vlaneseq
    %v51 = vshrl.u32 %v50, 7
    %v52 = vsub.s32 %v49, %v51
    %v53 = vrot.slane %v39, %v52
    %v54 = vcombine.high %v46, %v46
    %v55 = vcombine.high %v53, %v53
    %vm64 = vcmask 1041408
    %v65 = vsel %vm64, %v29, 0.0
    %v66 = vsel %vm64, %v37, 0.0
    %v67 = vadd.f32 %v65, %v66
    %v68 = vsel %vm64, %v36, 0.0
    %v69 = vadd.f32 %v67, %v68
    %v70 = vsel %vm64, %v38, 0.0
    %v71 = vadd.f32 %v69, %v70
    %v72 = vsel %vm64, %v46, 0.0
    %v73 = vadd.f32 %v71, %v72
    %v74 = vsel %vm64, %v54, 0.0
    %v75 = vadd.f32 %v73, %v74
    %v76 = vsel %vm64, %v53, 0.0
    %v77 = vadd.f32 %v75, %v76
    %v78 = vsel %vm64, %v55, 0.0
    %v79 = vadd.f32 %v77, %v78
    %80 = vadd.xlane.f32.xlu0 %v79
    %v81 = vpop.xlane.xlu0 %80
    %v82 = vrot.slane %v81, 4
    %v83 = vadd.f32 %v81, %v82
    %v84 = vrot.slane %v83, 2
    %v85 = vadd.f32 %v83, %v84
    %v86 = vrot.slane %v85, 1
    %v87 = vadd.f32 %v85, %v86
    %s88 = vtos %v87
    %s89 = scalar_lea.smem [#allocation2], 0
    %90 = sst [smem:[%s89]] %s88
    // Predicated region
    $region10: #{content_loss_forward.1} parent=1 // pred_check
      _
    $region11: #{content_loss_forward.1} parent=1 // pred_check_branch
      %92 = sbr.rel (0) target = $region13
    $region12: #{content_loss_forward.1} parent=1 // pred_region
      %s94 = ssub.s32 16, 16
      %95 = vsyncadd [#allocation3], %s94
      %98 = dma.smem_to_hbm [#allocation2], 16, %s2, [#allocation3]
    $region13: #{content_loss_forward.1} parent=1 // pred_fallthru
      _
    // Predicated region
    $region14: #{content_loss_forward.1} parent=1 // pred_check
      _
    $region15: #{content_loss_forward.1} parent=1 // pred_check_branch
      %100 = sbr.rel (0) target = $region17
    $region16: #{content_loss_forward.1} parent=1 // pred_region
      %101 = dma.done [#allocation3], 16
    $region17: #{content_loss_forward.1} parent=1 // pred_fallthru
      _
    %102 = sfence
    %103 = vsyncpa [#allocation3], 1

</llo_original>
